<compile_context>
chip_gen: v6e
topology: v6e:2x2x1
jax: 0.10.0
libtpu: 0.0.40
codegen_flags: <defaults>
</compile_context>

<pallas_src>
import functools

import jax
import jax.numpy as jnp
from jax import lax
from jax.experimental import pallas as pl
from jax.experimental.pallas import tpu as pltpu


def _residual_block_kernel(x_ref, w1_ref, w2_ref, o_ref, xpad_ref, mpad_ref,
                           *, Nb, H, WC):
    """One batch-block (Nb images) per grid step.

    x_ref : (Nb, H, WC)          f32   input / residual slabs (lane-dense)
    w1_ref: (3, WC, WC)          bf16  banded conv1 weights (resident)
    w2_ref: (3, WC, WC)          bf16  banded conv2 weights (resident)
    o_ref : (Nb, H, WC)          f32   output slabs
    xpad_ref, mpad_ref: (Nb*(H+2), WC) bf16 height-padded scratch
    """
    Hp = H + 2
    T = Nb * Hp
    f32 = jnp.float32
    bf16 = jnp.bfloat16

    # Zero only the 2 halo rows per image in both padded buffers (interiors
    # are fully overwritten).  Re-done every grid step so the kernel stays
    # correct if the batch axis is sharded across TensorCores.
    zrow = jnp.zeros((1, WC), bf16)
    for pad in (xpad_ref, mpad_ref):
        for i in range(Nb):
            pad[i * Hp:i * Hp + 1, :] = zrow
            pad[(i + 1) * Hp - 1:(i + 1) * Hp, :] = zrow

    # Stage the f32 input slabs into the bf16 height-padded scratch once; the
    # same resident x_ref tile provides the f32 residual below.
    for i in range(Nb):
        xpad_ref[i * Hp + 1:i * Hp + 1 + H, :] = x_ref[i].astype(bf16)

    def conv_banded(src_ref, w_ref):
        # 3x3 conv = 3 banded MXU matmuls over the WHOLE padded slab
        # (M = Nb*(H+2) rows, K = N = WC lanes), then sublane-shifted adds:
        #   out[padrow r] = Y0[r-1] + Y1[r] + Y2[r+1]
        # Width padding is implicit in the banded weights; height padding is
        # the zeroed halo rows.
        src = src_ref[...]
        y0 = jnp.dot(src, w_ref[0], preferred_element_type=f32)
        y1 = jnp.dot(src, w_ref[1], preferred_element_type=f32)
        y2 = jnp.dot(src, w_ref[2], preferred_element_type=f32)
        # Row j of the result corresponds to padrow r = j + 1.
        return y0[0:T - 2] + y1[1:T - 1] + y2[2:T]

    # conv1 + ReLU -> bf16 padded intermediate (interior rows only; halo rows
    # stay zero and act as conv2's height padding).
    mid = jnp.maximum(conv_banded(xpad_ref, w1_ref), 0.0).astype(bf16)
    for i in range(Nb):
        mpad_ref[i * Hp + 1:i * Hp + 1 + H, :] = mid[i * Hp:i * Hp + H]

    # conv2 + residual + ReLU -> lane-dense output stores.
    out = conv_banded(mpad_ref, w2_ref)
    for i in range(Nb):
        o_ref[i] = jnp.maximum(out[i * Hp:i * Hp + H] + x_ref[i],
                               0.0).astype(o_ref.dtype)


def _banded_weights(w_hwio, W):
    """(3,3,Cin,Cout) -> (3, W*Cin, W*Cout) bf16 banded (width-Toeplitz) matrices.

    B[kh][wi*Cin + ci, wo*Cout + co] = w_hwio[kh, wi - wo + 1, ci, co]
        if |wi - wo| <= 1 else 0
    so each kh tap of the 3x3 conv becomes a single lane-filled matmul on the
    flattened (rows, W*C) activation slab, with width padding built in.
    """
    kh_dim, kw_dim, cin, cout = w_hwio.shape
    wi = jnp.arange(W)[:, None]
    wo = jnp.arange(W)[None, :]
    kw = wi - wo + 1                                  # (W, W)
    valid = (kw >= 0) & (kw < kw_dim)
    kw_c = jnp.clip(kw, 0, kw_dim - 1)
    w_f32 = w_hwio.astype(jnp.float32)
    bands = []
    for kh in range(kh_dim):
        taps = w_f32[kh][kw_c]                        # (W, W, Cin, Cout)
        taps = jnp.where(valid[:, :, None, None], taps, 0.0)
        band = jnp.transpose(taps, (0, 2, 1, 3)).reshape(W * cin, W * cout)
        bands.append(band)
    return jnp.stack(bands).astype(jnp.bfloat16)      # (3, W*Cin, W*Cout)


def residual_block_pallas(x_nhwc, w1_hwio, w2_hwio):
    N, H, W, C = x_nhwc.shape
    WC = W * C
    assert w1_hwio.shape == (3, 3, C, C) and w2_hwio.shape == (3, 3, C, C)
    # Lane-density / VMEM guards (perf-review correctness concerns).
    assert WC % 128 == 0, "W*C must be a multiple of 128 for lane-dense slabs"
    weight_bytes = 2 * 2 * 3 * WC * WC * 2   # 2 convs x 2 pipeline bufs x 3 bands, bf16
    assert weight_bytes <= 24 * 1024 * 1024, (
        "banded weights too large for VMEM; tile the W axis")
    # TODO(synk): stride > 1 is not implemented (the PyTorch residual add
    # requires stride == 1 and Cin == Cout anyway).

    w1_bd = _banded_weights(w1_hwio, W)
    w2_bd = _banded_weights(w2_hwio, W)

    # Fold batch into the matmul M dimension: pick the largest divisor of N
    # such that Nb*(H+2) stays near/below 128 rows per grid step.
    target = max(1, 128 // (H + 2))
    Nb = 1
    for d in range(1, N + 1):
        if N % d == 0 and d <= target:
            Nb = d
    grid_n = N // Nb

    # Lane-dense slab view (free reshape, row-major compatible): last dim = W*C.
    x_flat = x_nhwc.reshape(N, H, WC)

    kernel = functools.partial(_residual_block_kernel, Nb=Nb, H=H, WC=WC)

    out_flat = pl.pallas_call(
        kernel,
        out_shape=jax.ShapeDtypeStruct((N, H, WC), x_nhwc.dtype),
        grid=(grid_n,),
        in_specs=[
            # Nb images per grid step.
            pl.BlockSpec((Nb, H, WC), lambda b: (b, 0, 0)),
            # Weights: constant block index -> DMA'd once, resident across
            # steps (extra pipeline buffer is only ~96 KiB/conv after banding).
            pl.BlockSpec((3, WC, WC), lambda b: (0, 0, 0)),
            pl.BlockSpec((3, WC, WC), lambda b: (0, 0, 0)),
        ],
        out_specs=pl.BlockSpec((Nb, H, WC), lambda b: (b, 0, 0)),
        scratch_shapes=[
            pltpu.VMEM((Nb * (H + 2), WC), jnp.bfloat16),  # padded input
            pltpu.VMEM((Nb * (H + 2), WC), jnp.bfloat16),  # padded conv1 out
        ],
        compiler_params=pltpu.CompilerParams(
            dimension_semantics=("parallel",),
            vmem_limit_bytes=32 * 1024 * 1024,
        ),
    )(x_flat, w1_bd, w2_bd)

    return out_flat.reshape(N, H, W, C)


def residual_block_ref(x_nhwc, w1_hwio, w2_hwio):
    """Pure-JAX reference matching the PyTorch forward (stride=1), with the
    same bf16 quantization points as the kernel (bf16 matmul inputs, f32
    accumulation, f32 residual add)."""
    f32 = jnp.float32
    bf16 = jnp.bfloat16
    xq = x_nhwc.astype(bf16).astype(f32)
    w1q = w1_hwio.astype(bf16).astype(f32)
    w2q = w2_hwio.astype(bf16).astype(f32)
    dn = lax.conv_dimension_numbers(x_nhwc.shape, w1_hwio.shape,
                                    ('NHWC', 'HWIO', 'NHWC'))
    c1 = lax.conv_general_dilated(xq, w1q, (1, 1), 'SAME',
                                  dimension_numbers=dn,
                                  precision=lax.Precision.HIGHEST)
    r1 = jnp.maximum(c1, 0.0).astype(bf16).astype(f32)
    c2 = lax.conv_general_dilated(r1, w2q, (1, 1), 'SAME',
                                  dimension_numbers=dn,
                                  precision=lax.Precision.HIGHEST)
    return jnp.maximum(c2 + x_nhwc, 0.0)


if __name__ == "__main__":
    # Small shapes; W * C = 128 so activation slabs are exactly lane-dense.
    # Residual add requires in_channels == out_channels, stride = 1.
    N, C, H, W = 2, 8, 16, 16

    key = jax.random.PRNGKey(0)
    kx, k1, k2 = jax.random.split(key, 3)

    # Input in PyTorch NCHW convention, transposed to NHWC for the kernel.
    x_nchw = jax.random.normal(kx, (N, C, H, W), dtype=jnp.float32)
    x_nhwc = jnp.transpose(x_nchw, (0, 2, 3, 1))

    # Conv weights in PyTorch OIHW, kaiming-style scaled, transposed to HWIO.
    fan_in = C * 3 * 3
    scale = (2.0 / fan_in) ** 0.5
    w1_oihw = scale * jax.random.normal(k1, (C, C, 3, 3), dtype=jnp.float32)
    w2_oihw = scale * jax.random.normal(k2, (C, C, 3, 3), dtype=jnp.float32)
    w1_hwio = jnp.transpose(w1_oihw, (2, 3, 1, 0))
    w2_hwio = jnp.transpose(w2_oihw, (2, 3, 1, 0))

    out = jax.block_until_ready(residual_block_pallas(x_nhwc, w1_hwio, w2_hwio))
    ref = residual_block_ref(x_nhwc, w1_hwio, w2_hwio)

    assert out.shape == (N, H, W, C)
    assert jnp.allclose(out, ref, rtol=3e-2, atol=3e-2), "mismatch vs reference"

    print("KERNEL_OK")
</pallas_src>

<mosaic_0001>
module attributes {stable_mosaic.version = 11 : i64} {
  func.func @_residual_block_kernel(%arg0: i32, %arg1: memref<2x16x128xf32, #tpu.memory_space<vmem>>, %arg2: memref<3x128x128xbf16, #tpu.memory_space<vmem>>, %arg3: memref<3x128x128xbf16, #tpu.memory_space<vmem>>, %arg4: memref<2x16x128xf32, #tpu.memory_space<vmem>>, %arg5: memref<36x128xbf16, #tpu.memory_space<vmem>>, %arg6: memref<36x128xbf16, #tpu.memory_space<vmem>>) attributes {dimension_semantics = [#tpu.dimension_semantics<parallel>], iteration_bounds = array<i64: 1>, scalar_prefetch = 0 : i64, scratch_operands = 2 : i64, tpu.core_type = #tpu.core_type<tc>, window_params = [{transform_indices = @transform_0, window_bounds = array<i64: 2, 16, 128>}, {pipeline_mode = #tpu.pipeline_mode<synchronous>, transform_indices = @transform_1, window_bounds = array<i64: 3, 128, 128>}, {pipeline_mode = #tpu.pipeline_mode<synchronous>, transform_indices = @transform_2, window_bounds = array<i64: 3, 128, 128>}, {transform_indices = @transform_3, window_bounds = array<i64: 2, 16, 128>}]} {
    %cst = arith.constant 0.000000e+00 : bf16
    %0 = vector.broadcast %cst : bf16 to vector<1x128xbf16>
    %c0 = arith.constant 0 : index
    %c0_0 = arith.constant 0 : index
    %1 = vector.load %arg5[%c0, %c0_0] : memref<36x128xbf16, #tpu.memory_space<vmem>>, vector<1x128xbf16>
    tpu.vector_store %arg5[%c0, %c0_0], %0 {strides = array<i32>} : memref<36x128xbf16, #tpu.memory_space<vmem>>, vector<1x128xbf16>,
    %c17 = arith.constant 17 : index
    %c0_1 = arith.constant 0 : index
    %2 = vector.load %arg5[%c17, %c0_1] : memref<36x128xbf16, #tpu.memory_space<vmem>>, vector<1x128xbf16>
    tpu.vector_store %arg5[%c17, %c0_1], %0 {strides = array<i32>} : memref<36x128xbf16, #tpu.memory_space<vmem>>, vector<1x128xbf16>,
    %c18 = arith.constant 18 : index
    %c0_2 = arith.constant 0 : index
    %3 = vector.load %arg5[%c18, %c0_2] : memref<36x128xbf16, #tpu.memory_space<vmem>>, vector<1x128xbf16>
    tpu.vector_store %arg5[%c18, %c0_2], %0 {strides = array<i32>} : memref<36x128xbf16, #tpu.memory_space<vmem>>, vector<1x128xbf16>,
    %c35 = arith.constant 35 : index
    %c0_3 = arith.constant 0 : index
    %4 = vector.load %arg5[%c35, %c0_3] : memref<36x128xbf16, #tpu.memory_space<vmem>>, vector<1x128xbf16>
    tpu.vector_store %arg5[%c35, %c0_3], %0 {strides = array<i32>} : memref<36x128xbf16, #tpu.memory_space<vmem>>, vector<1x128xbf16>,
    %c0_4 = arith.constant 0 : index
    %c0_5 = arith.constant 0 : index
    %5 = vector.load %arg6[%c0_4, %c0_5] : memref<36x128xbf16, #tpu.memory_space<vmem>>, vector<1x128xbf16>
    tpu.vector_store %arg6[%c0_4, %c0_5], %0 {strides = array<i32>} : memref<36x128xbf16, #tpu.memory_space<vmem>>, vector<1x128xbf16>,
    %c17_6 = arith.constant 17 : index
    %c0_7 = arith.constant 0 : index
    %6 = vector.load %arg6[%c17_6, %c0_7] : memref<36x128xbf16, #tpu.memory_space<vmem>>, vector<1x128xbf16>
    tpu.vector_store %arg6[%c17_6, %c0_7], %0 {strides = array<i32>} : memref<36x128xbf16, #tpu.memory_space<vmem>>, vector<1x128xbf16>,
    %c18_8 = arith.constant 18 : index
    %c0_9 = arith.constant 0 : index
    %7 = vector.load %arg6[%c18_8, %c0_9] : memref<36x128xbf16, #tpu.memory_space<vmem>>, vector<1x128xbf16>
    tpu.vector_store %arg6[%c18_8, %c0_9], %0 {strides = array<i32>} : memref<36x128xbf16, #tpu.memory_space<vmem>>, vector<1x128xbf16>,
    %c35_10 = arith.constant 35 : index
    %c0_11 = arith.constant 0 : index
    %8 = vector.load %arg6[%c35_10, %c0_11] : memref<36x128xbf16, #tpu.memory_space<vmem>>, vector<1x128xbf16>
    tpu.vector_store %arg6[%c35_10, %c0_11], %0 {strides = array<i32>} : memref<36x128xbf16, #tpu.memory_space<vmem>>, vector<1x128xbf16>,
    %c0_12 = arith.constant 0 : index
    %c0_13 = arith.constant 0 : index
    %c0_14 = arith.constant 0 : index
    %9 = vector.load %arg1[%c0_12, %c0_13, %c0_14] : memref<2x16x128xf32, #tpu.memory_space<vmem>>, vector<1x16x128xf32>
    %10 = vector.shape_cast %9 : vector<1x16x128xf32> to vector<16x128xf32>
    %11 = arith.truncf %10 : vector<16x128xf32> to vector<16x128xbf16>
    %c1 = arith.constant 1 : index
    %c0_15 = arith.constant 0 : index
    %12 = vector.load %arg5[%c1, %c0_15] : memref<36x128xbf16, #tpu.memory_space<vmem>>, vector<16x128xbf16>
    tpu.vector_store %arg5[%c1, %c0_15], %11 {strides = array<i32>} : memref<36x128xbf16, #tpu.memory_space<vmem>>, vector<16x128xbf16>,
    %c1_16 = arith.constant 1 : index
    %c0_17 = arith.constant 0 : index
    %c0_18 = arith.constant 0 : index
    %13 = vector.load %arg1[%c1_16, %c0_17, %c0_18] : memref<2x16x128xf32, #tpu.memory_space<vmem>>, vector<1x16x128xf32>
    %14 = vector.shape_cast %13 : vector<1x16x128xf32> to vector<16x128xf32>
    %15 = arith.truncf %14 : vector<16x128xf32> to vector<16x128xbf16>
    %c19 = arith.constant 19 : index
    %c0_19 = arith.constant 0 : index
    %16 = vector.load %arg5[%c19, %c0_19] : memref<36x128xbf16, #tpu.memory_space<vmem>>, vector<16x128xbf16>
    tpu.vector_store %arg5[%c19, %c0_19], %15 {strides = array<i32>} : memref<36x128xbf16, #tpu.memory_space<vmem>>, vector<16x128xbf16>,
    %c0_20 = arith.constant 0 : index
    %c0_21 = arith.constant 0 : index
    %17 = vector.load %arg5[%c0_20, %c0_21] : memref<36x128xbf16, #tpu.memory_space<vmem>>, vector<36x128xbf16>
    %c0_22 = arith.constant 0 : index
    %c0_23 = arith.constant 0 : index
    %c0_24 = arith.constant 0 : index
    %18 = vector.load %arg2[%c0_22, %c0_23, %c0_24] : memref<3x128x128xbf16, #tpu.memory_space<vmem>>, vector<1x128x128xbf16>
    %19 = vector.shape_cast %18 : vector<1x128x128xbf16> to vector<128x128xbf16>
    %cst_25 = arith.constant dense<0.000000e+00> : vector<36x128xf32>
    %20 = tpu.matmul %17, %19, %cst_25 {dimension_numbers = #tpu.dot_dimension_numbers<[1], [0], [0], [1], [0, 0, 1, 1], [], []>} : vector<36x128xbf16>, vector<128x128xbf16>, vector<36x128xf32> -> vector<36x128xf32>
    %c1_26 = arith.constant 1 : index
    %c0_27 = arith.constant 0 : index
    %c0_28 = arith.constant 0 : index
    %21 = vector.load %arg2[%c1_26, %c0_27, %c0_28] : memref<3x128x128xbf16, #tpu.memory_space<vmem>>, vector<1x128x128xbf16>
    %22 = vector.shape_cast %21 : vector<1x128x128xbf16> to vector<128x128xbf16>
    %cst_29 = arith.constant dense<0.000000e+00> : vector<36x128xf32>
    %23 = tpu.matmul %17, %22, %cst_29 {dimension_numbers = #tpu.dot_dimension_numbers<[1], [0], [0], [1], [0, 0, 1, 1], [], []>} : vector<36x128xbf16>, vector<128x128xbf16>, vector<36x128xf32> -> vector<36x128xf32>
    %c2 = arith.constant 2 : index
    %c0_30 = arith.constant 0 : index
    %c0_31 = arith.constant 0 : index
    %24 = vector.load %arg2[%c2, %c0_30, %c0_31] : memref<3x128x128xbf16, #tpu.memory_space<vmem>>, vector<1x128x128xbf16>
    %25 = vector.shape_cast %24 : vector<1x128x128xbf16> to vector<128x128xbf16>
    %cst_32 = arith.constant dense<0.000000e+00> : vector<36x128xf32>
    %26 = tpu.matmul %17, %25, %cst_32 {dimension_numbers = #tpu.dot_dimension_numbers<[1], [0], [0], [1], [0, 0, 1, 1], [], []>} : vector<36x128xbf16>, vector<128x128xbf16>, vector<36x128xf32> -> vector<36x128xf32>
    %27 = vector.extract_strided_slice %20 {offsets = [0, 0], sizes = [34, 128], strides = [1, 1]} : vector<36x128xf32> to vector<34x128xf32>
    %28 = vector.extract_strided_slice %23 {offsets = [1, 0], sizes = [34, 128], strides = [1, 1]} : vector<36x128xf32> to vector<34x128xf32>
    %29 = arith.addf %27, %28 : vector<34x128xf32>
    %30 = vector.extract_strided_slice %26 {offsets = [2, 0], sizes = [34, 128], strides = [1, 1]} : vector<36x128xf32> to vector<34x128xf32>
    %31 = arith.addf %29, %30 : vector<34x128xf32>
    %cst_33 = arith.constant 0.000000e+00 : f32
    %32 = vector.broadcast %cst_33 : f32 to vector<34x128xf32>
    %33 = arith.maximumf %31, %32 : vector<34x128xf32>
    %34 = arith.truncf %33 : vector<34x128xf32> to vector<34x128xbf16>
    %35 = vector.extract_strided_slice %34 {offsets = [0, 0], sizes = [16, 128], strides = [1, 1]} : vector<34x128xbf16> to vector<16x128xbf16>
    %c1_34 = arith.constant 1 : index
    %c0_35 = arith.constant 0 : index
    %36 = vector.load %arg6[%c1_34, %c0_35] : memref<36x128xbf16, #tpu.memory_space<vmem>>, vector<16x128xbf16>
    tpu.vector_store %arg6[%c1_34, %c0_35], %35 {strides = array<i32>} : memref<36x128xbf16, #tpu.memory_space<vmem>>, vector<16x128xbf16>,
    %37 = vector.extract_strided_slice %34 {offsets = [18, 0], sizes = [16, 128], strides = [1, 1]} : vector<34x128xbf16> to vector<16x128xbf16>
    %c19_36 = arith.constant 19 : index
    %c0_37 = arith.constant 0 : index
    %38 = vector.load %arg6[%c19_36, %c0_37] : memref<36x128xbf16, #tpu.memory_space<vmem>>, vector<16x128xbf16>
    tpu.vector_store %arg6[%c19_36, %c0_37], %37 {strides = array<i32>} : memref<36x128xbf16, #tpu.memory_space<vmem>>, vector<16x128xbf16>,
    %c0_38 = arith.constant 0 : index
    %c0_39 = arith.constant 0 : index
    %39 = vector.load %arg6[%c0_38, %c0_39] : memref<36x128xbf16, #tpu.memory_space<vmem>>, vector<36x128xbf16>
    %c0_40 = arith.constant 0 : index
    %c0_41 = arith.constant 0 : index
    %c0_42 = arith.constant 0 : index
    %40 = vector.load %arg3[%c0_40, %c0_41, %c0_42] : memref<3x128x128xbf16, #tpu.memory_space<vmem>>, vector<1x128x128xbf16>
    %41 = vector.shape_cast %40 : vector<1x128x128xbf16> to vector<128x128xbf16>
    %cst_43 = arith.constant dense<0.000000e+00> : vector<36x128xf32>
    %42 = tpu.matmul %39, %41, %cst_43 {dimension_numbers = #tpu.dot_dimension_numbers<[1], [0], [0], [1], [0, 0, 1, 1], [], []>} : vector<36x128xbf16>, vector<128x128xbf16>, vector<36x128xf32> -> vector<36x128xf32>
    %c1_44 = arith.constant 1 : index
    %c0_45 = arith.constant 0 : index
    %c0_46 = arith.constant 0 : index
    %43 = vector.load %arg3[%c1_44, %c0_45, %c0_46] : memref<3x128x128xbf16, #tpu.memory_space<vmem>>, vector<1x128x128xbf16>
    %44 = vector.shape_cast %43 : vector<1x128x128xbf16> to vector<128x128xbf16>
    %cst_47 = arith.constant dense<0.000000e+00> : vector<36x128xf32>
    %45 = tpu.matmul %39, %44, %cst_47 {dimension_numbers = #tpu.dot_dimension_numbers<[1], [0], [0], [1], [0, 0, 1, 1], [], []>} : vector<36x128xbf16>, vector<128x128xbf16>, vector<36x128xf32> -> vector<36x128xf32>
    %c2_48 = arith.constant 2 : index
    %c0_49 = arith.constant 0 : index
    %c0_50 = arith.constant 0 : index
    %46 = vector.load %arg3[%c2_48, %c0_49, %c0_50] : memref<3x128x128xbf16, #tpu.memory_space<vmem>>, vector<1x128x128xbf16>
    %47 = vector.shape_cast %46 : vector<1x128x128xbf16> to vector<128x128xbf16>
    %cst_51 = arith.constant dense<0.000000e+00> : vector<36x128xf32>
    %48 = tpu.matmul %39, %47, %cst_51 {dimension_numbers = #tpu.dot_dimension_numbers<[1], [0], [0], [1], [0, 0, 1, 1], [], []>} : vector<36x128xbf16>, vector<128x128xbf16>, vector<36x128xf32> -> vector<36x128xf32>
    %49 = vector.extract_strided_slice %42 {offsets = [0, 0], sizes = [34, 128], strides = [1, 1]} : vector<36x128xf32> to vector<34x128xf32>
    %50 = vector.extract_strided_slice %45 {offsets = [1, 0], sizes = [34, 128], strides = [1, 1]} : vector<36x128xf32> to vector<34x128xf32>
    %51 = arith.addf %49, %50 : vector<34x128xf32>
    %52 = vector.extract_strided_slice %48 {offsets = [2, 0], sizes = [34, 128], strides = [1, 1]} : vector<36x128xf32> to vector<34x128xf32>
    %53 = arith.addf %51, %52 : vector<34x128xf32>
    %54 = vector.extract_strided_slice %53 {offsets = [0, 0], sizes = [16, 128], strides = [1, 1]} : vector<34x128xf32> to vector<16x128xf32>
    %c0_52 = arith.constant 0 : index
    %c0_53 = arith.constant 0 : index
    %c0_54 = arith.constant 0 : index
    %55 = vector.load %arg1[%c0_52, %c0_53, %c0_54] : memref<2x16x128xf32, #tpu.memory_space<vmem>>, vector<1x16x128xf32>
    %56 = vector.shape_cast %55 : vector<1x16x128xf32> to vector<16x128xf32>
    %57 = arith.addf %54, %56 : vector<16x128xf32>
    %cst_55 = arith.constant 0.000000e+00 : f32
    %58 = vector.broadcast %cst_55 : f32 to vector<16x128xf32>
    %59 = arith.maximumf %57, %58 : vector<16x128xf32>
    %c0_56 = arith.constant 0 : index
    %c0_57 = arith.constant 0 : index
    %c0_58 = arith.constant 0 : index
    %60 = vector.load %arg4[%c0_56, %c0_57, %c0_58] : memref<2x16x128xf32, #tpu.memory_space<vmem>>, vector<1x16x128xf32>
    %61 = vector.shape_cast %60 : vector<1x16x128xf32> to vector<16x128xf32>
    %62 = vector.shape_cast %59 : vector<16x128xf32> to vector<1x16x128xf32>
    tpu.vector_store %arg4[%c0_56, %c0_57, %c0_58], %62 {strides = array<i32>} : memref<2x16x128xf32, #tpu.memory_space<vmem>>, vector<1x16x128xf32>,
    %63 = vector.extract_strided_slice %53 {offsets = [18, 0], sizes = [16, 128], strides = [1, 1]} : vector<34x128xf32> to vector<16x128xf32>
    %c1_59 = arith.constant 1 : index
    %c0_60 = arith.constant 0 : index
    %c0_61 = arith.constant 0 : index
    %64 = vector.load %arg1[%c1_59, %c0_60, %c0_61] : memref<2x16x128xf32, #tpu.memory_space<vmem>>, vector<1x16x128xf32>
    %65 = vector.shape_cast %64 : vector<1x16x128xf32> to vector<16x128xf32>
    %66 = arith.addf %63, %65 : vector<16x128xf32>
    %cst_62 = arith.constant 0.000000e+00 : f32
    %67 = vector.broadcast %cst_62 : f32 to vector<16x128xf32>
    %68 = arith.maximumf %66, %67 : vector<16x128xf32>
    %c1_63 = arith.constant 1 : index
    %c0_64 = arith.constant 0 : index
    %c0_65 = arith.constant 0 : index
    %69 = vector.load %arg4[%c1_63, %c0_64, %c0_65] : memref<2x16x128xf32, #tpu.memory_space<vmem>>, vector<1x16x128xf32>
    %70 = vector.shape_cast %69 : vector<1x16x128xf32> to vector<16x128xf32>
    %71 = vector.shape_cast %68 : vector<16x128xf32> to vector<1x16x128xf32>
    tpu.vector_store %arg4[%c1_63, %c0_64, %c0_65], %71 {strides = array<i32>} : memref<2x16x128xf32, #tpu.memory_space<vmem>>, vector<1x16x128xf32>,
    return
  }
  func.func @transform_0(%arg0: i32) -> (i32, i32, i32) {
    %c0_i32 = arith.constant 0 : i32
    %c0_i32_0 = arith.constant 0 : i32
    %c0_i32_1 = arith.constant 0 : i32
    return %arg0, %c0_i32, %c0_i32_0 : i32, i32, i32
  }
  func.func @transform_1(%arg0: i32) -> (i32, i32, i32) {
    %c0_i32 = arith.constant 0 : i32
    %c0_i32_0 = arith.constant 0 : i32
    %c0_i32_1 = arith.constant 0 : i32
    %c0_i32_2 = arith.constant 0 : i32
    return %c0_i32, %c0_i32_0, %c0_i32_1 : i32, i32, i32
  }
  func.func @transform_2(%arg0: i32) -> (i32, i32, i32) {
    %c0_i32 = arith.constant 0 : i32
    %c0_i32_0 = arith.constant 0 : i32
    %c0_i32_1 = arith.constant 0 : i32
    %c0_i32_2 = arith.constant 0 : i32
    return %c0_i32, %c0_i32_0, %c0_i32_1 : i32, i32, i32
  }
  func.func @transform_3(%arg0: i32) -> (i32, i32, i32) {
    %c0_i32 = arith.constant 0 : i32
    %c0_i32_0 = arith.constant 0 : i32
    %c0_i32_1 = arith.constant 0 : i32
    return %arg0, %c0_i32, %c0_i32_0 : i32, i32, i32
  }
}

</mosaic_0001>

<llo_original>
// kernel: tpu_custom_call.1
$region0: #{tpu_custom_call.1}
  #allocation0 [shape = 'u32[]', space=smem, size = 0x4, offset = 0x4, fixed_abs, tag = 'smem constant byte address 0x4 - core index']
  #allocation1 [shape = 'u32[144,128]{1,0:T(1,128)}', space=vmem, size = 0x12000, scoped, tag = 'internal scratch']
  #allocation2 [shape = 'bf16[36,128]{1,0:T(8,128)(2,1)}', space=vmem, size = 0x2800, scoped, tag = 'scratch operand']
  #allocation3 [shape = 'bf16[36,128]{1,0:T(8,128)(2,1)}', space=vmem, size = 0x2800, scoped, tag = 'scratch operand']
  %s0 = inlined_call_operand.hbm [shape: f32[2,16,128], index: 0, kind: input, shape index: {}]
  %s1 = inlined_call_operand.hbm [shape: bf16[3,128,128], index: 1, kind: input, shape index: {}]
  %s2 = inlined_call_operand.hbm [shape: bf16[3,128,128], index: 2, kind: input, shape index: {}]
  %s3 = inlined_call_operand.hbm [shape: f32[2,16,128], index: 3, kind: output, shape index: {}]
  %s4 = sld [smem:[#allocation0]]
  $region34: #{tpu_custom_call.1} parent=0
    _
  %s6 = ssub.s32 1, %s4
  %s7 = scalar_select 0, %s6, %s4
  $region1: #{tpu_custom_call.1} parent=0
    #allocation4 [shape = 'u8[16384]{0}', space=vmem, size = 0x4000, scoped, tag = 'input window, operand 0, single buffered']
    #allocation5 [shape = 's32[1]{0}', space=sflag, size = 0x4, scoped, tag = 'scoped memory for tpu_custom_call.1']
    #allocation6 [shape = 's32[1]{0}', space=sflag, size = 0x4, scoped, tag = 'scoped memory for tpu_custom_call.1']
    #allocation7 [shape = 'u8[98304]{0}', space=vmem, size = 0x18000, scoped, tag = 'input window, operand 1, single buffered']
    #allocation8 [shape = 's32[1]{0}', space=sflag, size = 0x4, scoped, tag = 'scoped memory for tpu_custom_call.1']
    #allocation9 [shape = 'u8[98304]{0}', space=vmem, size = 0x18000, scoped, tag = 'input window, operand 2, single buffered']
    #allocation10 [shape = 'u8[16384]{0}', space=vmem, size = 0x4000, scoped, tag = 'output window, operand 0, single buffered']
    %8 = vsyncpa [#allocation5], 0
    %9 = vsyncpa [#allocation8], 0
    %10 = vsyncpa [#allocation6], 0
    // Predicated region
    $region2: #{tpu_custom_call.1} parent=1 // pred_check
      _
    $region3: #{tpu_custom_call.1} parent=1 // pred_check_branch
      %12 = sbr.rel (0) target = $region5
    $region4: #{tpu_custom_call.1} parent=1 // pred_region
      %s14 = ssub.s32 512, 512
      %15 = vsyncadd [#allocation5], %s14
      %s16 = sshll.u32 [#allocation4], 4
      %s17 = int_to_ptr.vmem [resolvable:$true] %s16
      %22 = dma.hbm_to_vmem [thread:$0]  %s0, 512, %s17, [#allocation5], 128, 128, 8
    $region5: #{tpu_custom_call.1} parent=1 // pred_fallthru
      _
    // Predicated region
    $region6: #{tpu_custom_call.1} parent=1 // pred_check
      _
    $region7: #{tpu_custom_call.1} parent=1 // pred_check_branch
      %24 = sbr.rel (0) target = $region9
    $region8: #{tpu_custom_call.1} parent=1 // pred_region
      %s26 = ssub.s32 3072, 3072
      %27 = vsyncadd [#allocation8], %s26
      %s28 = sshll.u32 [#allocation7], 4
      %s29 = int_to_ptr.vmem [resolvable:$true] %s28
      %34 = dma.hbm_to_vmem [thread:$0]  %s1, 3072, %s29, [#allocation8], 64, 64, 4
    $region9: #{tpu_custom_call.1} parent=1 // pred_fallthru
      _
    // Predicated region
    $region10: #{tpu_custom_call.1} parent=1 // pred_check
      _
    $region11: #{tpu_custom_call.1} parent=1 // pred_check_branch
      %36 = sbr.rel (0) target = $region13
    $region12: #{tpu_custom_call.1} parent=1 // pred_region
      %s38 = ssub.s32 3072, 3072
      %39 = vsyncadd [#allocation8], %s38
      %s40 = sshll.u32 [#allocation9], 4
      %s41 = int_to_ptr.vmem [resolvable:$true] %s40
      %46 = dma.hbm_to_vmem [thread:$0]  %s2, 3072, %s41, [#allocation8], 64, 64, 4
    $region13: #{tpu_custom_call.1} parent=1 // pred_fallthru
      _
    // Predicated region
    $region14: #{tpu_custom_call.1} parent=1 // pred_check
      _
    $region15: #{tpu_custom_call.1} parent=1 // pred_check_branch
      %48 = sbr.rel (0) target = $region17
    $region16: #{tpu_custom_call.1} parent=1 // pred_region
      %49 = dma.done [#allocation5], 512
    $region17: #{tpu_custom_call.1} parent=1 // pred_fallthru
      _
    // Predicated region
    $region18: #{tpu_custom_call.1} parent=1 // pred_check
      _
    $region19: #{tpu_custom_call.1} parent=1 // pred_check_branch
      %51 = sbr.rel (0) target = $region21
    $region20: #{tpu_custom_call.1} parent=1 // pred_region
      %52 = dma.done [#allocation8], 3072
    $region21: #{tpu_custom_call.1} parent=1 // pred_fallthru
      _
    // Predicated region
    $region22: #{tpu_custom_call.1} parent=1 // pred_check
      _
    $region23: #{tpu_custom_call.1} parent=1 // pred_check_branch
      %54 = sbr.rel (0) target = $region25
    $region24: #{tpu_custom_call.1} parent=1 // pred_region
      %55 = dma.done [#allocation8], 3072
    $region25: #{tpu_custom_call.1} parent=1 // pred_fallthru
      _
    %vm57 = vcmask 1040384
    %vm58 = vsmask.f32 256
    %vm59 = vmand %vm57, %vm58
    %v60 = vld [vmem:[#allocation2] sm:$0x1]
    %v61 = vsel %vm59, 0, %v60
    %62 = vst [vmem:[#allocation2] sm:$0x1] %v61
    %vm63 = vsmask.f32 7938
    %vm64 = vmand %vm57, %vm63
    %v65 = vld [vmem:[#allocation2 + $0x8] sm:$0x1]
    %v66 = vsel %vm64, 0, %v65
    %67 = vst [vmem:[#allocation2 + $0x8] sm:$0x1] %v66
    %vm68 = vcmask 1041409
    %vm69 = vsmask.f32 1280
    %vm70 = vmand %vm68, %vm69
    %v71 = vld [vmem:[#allocation2 + $0x8] sm:$0x2]
    %v72 = vsel %vm70, 0, %v71
    %73 = vst [vmem:[#allocation2 + $0x8] sm:$0x2] %v72
    %vm74 = vsmask.f32 7942
    %vm75 = vmand %vm68, %vm74
    %v76 = vld [vmem:[#allocation2 + $0x10] sm:$0x2]
    %v77 = vsel %vm75, 0, %v76
    %78 = vst [vmem:[#allocation2 + $0x10] sm:$0x2] %v77
    %v79 = vld [vmem:[#allocation3] sm:$0x1]
    %v80 = vsel %vm59, 0, %v79
    %81 = vst [vmem:[#allocation3] sm:$0x1] %v80
    %v82 = vld [vmem:[#allocation3 + $0x8] sm:$0x1]
    %v83 = vsel %vm64, 0, %v82
    %84 = vst [vmem:[#allocation3 + $0x8] sm:$0x1] %v83
    %v85 = vld [vmem:[#allocation3 + $0x8] sm:$0x2]
    %v86 = vsel %vm70, 0, %v85
    %87 = vst [vmem:[#allocation3 + $0x8] sm:$0x2] %v86
    %v88 = vld [vmem:[#allocation3 + $0x10] sm:$0x2]
    %v89 = vsel %vm75, 0, %v88
    %90 = vst [vmem:[#allocation3 + $0x10] sm:$0x2] %v89
    %v91 = vld [vmem:[#allocation4] sm:$0xff]
    %v92 = vld [vmem:[#allocation4 + $0x8] sm:$0xff]
    %v93 = vpack.c.bf16 %v92, %v91
    %v95 = vunpack.c.l.b16 %v93
    %v96 = vunpack.c.h.b16 %v93
    %v97 = vpack.c.b16 %v95, %v95
    %v98 = vpack.c.b16 %v96, %v96
    %vm99 = vsmask.f32 4368
    %vm100 = vmor %vm58, %vm99
    %v102 = vshrl.u32 %v97, 16
    %v104 = vrot.slane %v102, 7
    %v105 = vshll.u32 %v97, 16
    %v107 = vor.u32 %v104, %v105
    %v108 = vrot.slane %v104, 4
    %v110 = vshrl.u32 %v98, 16
    %v112 = vrot.slane %v110, 7
    %v113 = vshll.u32 %v98, 16
    %v115 = vor.u32 %v112, %v113
    %v116 = vsel %vm100, %v108, %v115
    %v117 = vrot.slane %v112, 4
    %vm121 = vcmask 1043456
    %vm122 = vmand %vm121, %vm63
    %v123 = vld [vmem:[#allocation2] sm:$0xf]
    %v124 = vsel %vm122, %v107, %v123
    %125 = vst [vmem:[#allocation2] sm:$0xf] %v124
    %126 = vst [vmem:[#allocation2 + $0x4] sm:$0xf] %v116
    %v127 = vld [vmem:[#allocation2 + $0x8] sm:$0x1]
    %v128 = vsel %vm59, %v117, %v127
    %129 = vst [vmem:[#allocation2 + $0x8] sm:$0x1] %v128
    %s130 = scalar_lea.vmem [#allocation4], 16
    %v131 = vld [vmem:[%s130] sm:$0xff]
    %v132 = vld [vmem:[%s130 + $0x8] sm:$0xff]
    %v133 = vpack.c.bf16 %v132, %v131
    %v135 = vunpack.c.l.b16 %v133
    %v136 = vunpack.c.h.b16 %v133
    %v137 = vpack.c.b16 %v135, %v135
    %v138 = vpack.c.b16 %v136, %v136
    %vm139 = vsmask.f32 5392
    %vm140 = vmor %vm69, %vm139
    %v142 = vshrl.u32 %v137, 16
    %v144 = vrot.slane %v142, 6
    %v145 = vshll.u32 %v137, 16
    %v147 = vrot.slane %v145, 7
    %v148 = vor.u32 %v144, %v147
    %v149 = vrot.slane %v148, 4
    %v151 = vshrl.u32 %v138, 16
    %v153 = vrot.slane %v151, 6
    %v154 = vshll.u32 %v138, 16
    %v156 = vrot.slane %v154, 7
    %v157 = vor.u32 %v153, %v156
    %v158 = vsel %vm140, %v149, %v157
    %v159 = vrot.slane %v157, 4
    %vm163 = vcmask 1043457
    %vm164 = vmand %vm163, %vm74
    %v165 = vld [vmem:[#allocation2 + $0x8] sm:$0xe]
    %v166 = vsel %vm164, %v148, %v165
    %167 = vst [vmem:[#allocation2 + $0x8] sm:$0xe] %v166
    %168 = vst [vmem:[#allocation2 + $0xc] sm:$0xf] %v158
    %vm169 = vcmask 1041408
    %vm170 = vmand %vm169, %vm69
    %v171 = vld [vmem:[#allocation2 + $0x10] sm:$0x3]
    %v172 = vsel %vm170, %v159, %v171
    %173 = vst [vmem:[#allocation2 + $0x10] sm:$0x3] %v172
    %v174 = vld [vmem:[#allocation2] sm:$0xf]
    %v175 = vld [vmem:[#allocation2 + $0x4] sm:$0xf]
    %v176 = vld [vmem:[#allocation2 + $0x8] sm:$0xf]
    %v177 = vld [vmem:[#allocation2 + $0xc] sm:$0xf]
    %v178 = vld [vmem:[#allocation2 + $0x10] sm:$0x3]
    %v179 = vld [vmem:[#allocation7] sm:$0xf]
    %v180 = vld [vmem:[#allocation7 + $0x4] sm:$0xf]
    %v181 = vld [vmem:[#allocation7 + $0x8] sm:$0xf]
    %v182 = vld [vmem:[#allocation7 + $0xc] sm:$0xf]
    %v183 = vld [vmem:[#allocation7 + $0x10] sm:$0xf]
    %v184 = vld [vmem:[#allocation7 + $0x14] sm:$0xf]
    %v185 = vld [vmem:[#allocation7 + $0x18] sm:$0xf]
    %v186 = vld [vmem:[#allocation7 + $0x1c] sm:$0xf]
    %v187 = vld [vmem:[#allocation7 + $0x20] sm:$0xf]
    %v188 = vld [vmem:[#allocation7 + $0x24] sm:$0xf]
    %v189 = vld [vmem:[#allocation7 + $0x28] sm:$0xf]
    %v190 = vld [vmem:[#allocation7 + $0x2c] sm:$0xf]
    %v191 = vld [vmem:[#allocation7 + $0x30] sm:$0xf]
    %v192 = vld [vmem:[#allocation7 + $0x34] sm:$0xf]
    %v193 = vld [vmem:[#allocation7 + $0x38] sm:$0xf]
    %v194 = vld [vmem:[#allocation7 + $0x3c] sm:$0xf]
    %v200 = vunpack.c.l.b16 %v174
    %v201 = vunpack.c.l.b16 %v175
    %v202 = vunpack.c.l.b16 %v176
    %v203 = vunpack.c.l.b16 %v177
    %v204 = vunpack.c.l.b16 %v178
    %v205 = vpack.c.b16 %v201, %v200
    %v206 = vpack.c.b16 %v203, %v202
    %v207 = vpack.c.b16 %v204, %v204
    %v227 = vunpack.c.l.b16 %v179
    %v228 = vunpack.c.l.b16 %v180
    %v229 = vunpack.c.l.b16 %v181
    %v230 = vunpack.c.l.b16 %v182
    %v231 = vunpack.c.l.b16 %v183
    %v232 = vunpack.c.l.b16 %v184
    %v233 = vunpack.c.l.b16 %v185
    %v234 = vunpack.c.l.b16 %v186
    %v235 = vunpack.c.l.b16 %v187
    %v236 = vunpack.c.l.b16 %v188
    %v237 = vunpack.c.l.b16 %v189
    %v238 = vunpack.c.l.b16 %v190
    %v239 = vunpack.c.l.b16 %v191
    %v240 = vunpack.c.l.b16 %v192
    %v241 = vunpack.c.l.b16 %v193
    %v242 = vunpack.c.l.b16 %v194
    %v243 = vpack.c.b16 %v228, %v227
    %v244 = vpack.c.b16 %v230, %v229
    %v245 = vpack.c.b16 %v232, %v231
    %v246 = vpack.c.b16 %v234, %v233
    %v247 = vpack.c.b16 %v236, %v235
    %v248 = vpack.c.b16 %v238, %v237
    %v249 = vpack.c.b16 %v240, %v239
    %v250 = vpack.c.b16 %v242, %v241
    %259 = vmatprep.subr.bf16.mxu0 0
    %260 = vmatpush1.bf16.msra.mxu0 %v250
    %261 = vmatprep.subr.bf16.mxu0 0
    %262 = vmatpush1.bf16.msra.mxu0 %v249
    %263 = vmatprep.subr.bf16.mxu0 0
    %264 = vmatpush1.bf16.msra.mxu0 %v248
    %265 = vmatprep.subr.bf16.mxu0 0
    %266 = vmatpush1.bf16.msra.mxu0 %v247
    %267 = vmatprep.subr.bf16.mxu0 0
    %268 = vmatpush1.bf16.msra.mxu0 %v246
    %269 = vmatprep.subr.bf16.mxu0 0
    %270 = vmatpush1.bf16.msra.mxu0 %v245
    %271 = vmatprep.subr.bf16.mxu0 0
    %272 = vmatpush1.bf16.msra.mxu0 %v244
    %273 = vmatprep.subr.bf16.mxu0 0
    %274 = vmatpush1.bf16.msra.mxu0 %v243
    %275 = vmatprep.subr.bf16.mxu0 0
    %276 = vmatpush2.bf16.msra.mxu0 0
    %277 = vmatprep.subr.bf16.mxu0 0
    %278 = vmatpush2.bf16.msra.mxu0 0
    %279 = vmatprep.subr.bf16.mxu0 0
    %280 = vmatpush2.bf16.msra.mxu0 0
    %281 = vmatprep.subr.bf16.mxu0 0
    %282 = vmatpush2.bf16.msra.mxu0 0
    %283 = vmatprep.subr.bf16.mxu0 0
    %284 = vmatpush2.bf16.msra.mxu0 0
    %285 = vmatprep.subr.bf16.mxu0 0
    %286 = vmatpush2.bf16.msra.mxu0 0
    %287 = vmatprep.subr.bf16.mxu0 0
    %288 = vmatpush2.bf16.msra.mxu0 0
    %289 = vmatprep.subr.bf16.mxu0 0
    %290 = vmatpush2.bf16.msra.mxu0 0
    %291 = vmatprep.mubr.bf16.mxu0 0
    %292 = vmatmul.mubr.bf16.gmra.mxu0 %v205
    %v293 = vpop.f32.mrf.mxu0
    %v294 = vadd.f32 0.0, %v293
    %v295 = vpop.f32.mrf.mxu0
    %v296 = vpop.f32.mrf.mxu0
    %v297 = vadd.f32 0.0, %v296
    %v298 = vpop.f32.mrf.mxu0
    %299 = vmatprep.mubr.bf16.mxu0 0
    %300 = vmatmul.mubr.bf16.gmra.mxu0 %v206
    %v301 = vpop.f32.mrf.mxu0
    %v302 = vadd.f32 0.0, %v301
    %v303 = vpop.f32.mrf.mxu0
    %v304 = vpop.f32.mrf.mxu0
    %v305 = vadd.f32 0.0, %v304
    %v306 = vpop.f32.mrf.mxu0
    %307 = vmatprep.mubr.bf16.mxu0 0
    %308 = vmatmul.mubr.bf16.gmra.mxu0 %v207
    %v309 = vpop.f32.mrf.mxu0
    %v310 = vadd.f32 0.0, %v309
    %v311 = vpop.f32.mrf.mxu0
    %v312 = vpop.f32.mrf.mxu0
    %v313 = vpop.f32.mrf.mxu0
    %314 = vdwg.mxu0
    %s315 = scalar_lea.vmem [#allocation7], 64
    %v316 = vld [vmem:[%s315] sm:$0xf]
    %v317 = vld [vmem:[%s315 + $0x4] sm:$0xf]
    %v318 = vld [vmem:[%s315 + $0x8] sm:$0xf]
    %v319 = vld [vmem:[%s315 + $0xc] sm:$0xf]
    %v320 = vld [vmem:[%s315 + $0x10] sm:$0xf]
    %v321 = vld [vmem:[%s315 + $0x14] sm:$0xf]
    %v322 = vld [vmem:[%s315 + $0x18] sm:$0xf]
    %v323 = vld [vmem:[%s315 + $0x1c] sm:$0xf]
    %v324 = vld [vmem:[%s315 + $0x20] sm:$0xf]
    %v325 = vld [vmem:[%s315 + $0x24] sm:$0xf]
    %v326 = vld [vmem:[%s315 + $0x28] sm:$0xf]
    %v327 = vld [vmem:[%s315 + $0x2c] sm:$0xf]
    %v328 = vld [vmem:[%s315 + $0x30] sm:$0xf]
    %v329 = vld [vmem:[%s315 + $0x34] sm:$0xf]
    %v330 = vld [vmem:[%s315 + $0x38] sm:$0xf]
    %v331 = vld [vmem:[%s315 + $0x3c] sm:$0xf]
    %v348 = vunpack.c.l.b16 %v316
    %v349 = vunpack.c.l.b16 %v317
    %v350 = vunpack.c.l.b16 %v318
    %v351 = vunpack.c.l.b16 %v319
    %v352 = vunpack.c.l.b16 %v320
    %v353 = vunpack.c.l.b16 %v321
    %v354 = vunpack.c.l.b16 %v322
    %v355 = vunpack.c.l.b16 %v323
    %v356 = vunpack.c.l.b16 %v324
    %v357 = vunpack.c.l.b16 %v325
    %v358 = vunpack.c.l.b16 %v326
    %v359 = vunpack.c.l.b16 %v327
    %v360 = vunpack.c.l.b16 %v328
    %v361 = vunpack.c.l.b16 %v329
    %v362 = vunpack.c.l.b16 %v330
    %v363 = vunpack.c.l.b16 %v331
    %v364 = vpack.c.b16 %v349, %v348
    %v365 = vpack.c.b16 %v351, %v350
    %v366 = vpack.c.b16 %v353, %v352
    %v367 = vpack.c.b16 %v355, %v354
    %v368 = vpack.c.b16 %v357, %v356
    %v369 = vpack.c.b16 %v359, %v358
    %v370 = vpack.c.b16 %v361, %v360
    %v371 = vpack.c.b16 %v363, %v362
    %380 = vmatprep.subr.bf16.mxu0 0
    %381 = vmatpush1.bf16.msra.mxu0 %v371
    %382 = vmatprep.subr.bf16.mxu0 0
    %383 = vmatpush1.bf16.msra.mxu0 %v370
    %384 = vmatprep.subr.bf16.mxu0 0
    %385 = vmatpush1.bf16.msra.mxu0 %v369
    %386 = vmatprep.subr.bf16.mxu0 0
    %387 = vmatpush1.bf16.msra.mxu0 %v368
    %388 = vmatprep.subr.bf16.mxu0 0
    %389 = vmatpush1.bf16.msra.mxu0 %v367
    %390 = vmatprep.subr.bf16.mxu0 0
    %391 = vmatpush1.bf16.msra.mxu0 %v366
    %392 = vmatprep.subr.bf16.mxu0 0
    %393 = vmatpush1.bf16.msra.mxu0 %v365
    %394 = vmatprep.subr.bf16.mxu0 0
    %395 = vmatpush1.bf16.msra.mxu0 %v364
    %396 = vmatprep.subr.bf16.mxu0 0
    %397 = vmatpush2.bf16.msra.mxu0 0
    %398 = vmatprep.subr.bf16.mxu0 0
    %399 = vmatpush2.bf16.msra.mxu0 0
    %400 = vmatprep.subr.bf16.mxu0 0
    %401 = vmatpush2.bf16.msra.mxu0 0
    %402 = vmatprep.subr.bf16.mxu0 0
    %403 = vmatpush2.bf16.msra.mxu0 0
    %404 = vmatprep.subr.bf16.mxu0 0
    %405 = vmatpush2.bf16.msra.mxu0 0
    %406 = vmatprep.subr.bf16.mxu0 0
    %407 = vmatpush2.bf16.msra.mxu0 0
    %408 = vmatprep.subr.bf16.mxu0 0
    %409 = vmatpush2.bf16.msra.mxu0 0
    %410 = vmatprep.subr.bf16.mxu0 0
    %411 = vmatpush2.bf16.msra.mxu0 0
    %412 = vmatprep.mubr.bf16.mxu0 0
    %413 = vmatmul.mubr.bf16.gmra.mxu0 %v205
    %v414 = vpop.f32.mrf.mxu0
    %v415 = vadd.f32 0.0, %v414
    %v416 = vpop.f32.mrf.mxu0
    %v417 = vpop.f32.mrf.mxu0
    %v418 = vadd.f32 0.0, %v417
    %v419 = vpop.f32.mrf.mxu0
    %420 = vmatprep.mubr.bf16.mxu0 0
    %421 = vmatmul.mubr.bf16.gmra.mxu0 %v206
    %v422 = vpop.f32.mrf.mxu0
    %v423 = vadd.f32 0.0, %v422
    %v424 = vpop.f32.mrf.mxu0
    %v425 = vpop.f32.mrf.mxu0
    %v426 = vadd.f32 0.0, %v425
    %v427 = vpop.f32.mrf.mxu0
    %428 = vmatprep.mubr.bf16.mxu0 0
    %429 = vmatmul.mubr.bf16.gmra.mxu0 %v207
    %v430 = vpop.f32.mrf.mxu0
    %v431 = vadd.f32 0.0, %v430
    %v432 = vpop.f32.mrf.mxu0
    %v433 = vpop.f32.mrf.mxu0
    %v434 = vpop.f32.mrf.mxu0
    %435 = vdwg.mxu0
    %s436 = scalar_lea.vmem [#allocation7], 128
    %v437 = vld [vmem:[%s436] sm:$0xf]
    %v438 = vld [vmem:[%s436 + $0x4] sm:$0xf]
    %v439 = vld [vmem:[%s436 + $0x8] sm:$0xf]
    %v440 = vld [vmem:[%s436 + $0xc] sm:$0xf]
    %v441 = vld [vmem:[%s436 + $0x10] sm:$0xf]
    %v442 = vld [vmem:[%s436 + $0x14] sm:$0xf]
    %v443 = vld [vmem:[%s436 + $0x18] sm:$0xf]
    %v444 = vld [vmem:[%s436 + $0x1c] sm:$0xf]
    %v445 = vld [vmem:[%s436 + $0x20] sm:$0xf]
    %v446 = vld [vmem:[%s436 + $0x24] sm:$0xf]
    %v447 = vld [vmem:[%s436 + $0x28] sm:$0xf]
    %v448 = vld [vmem:[%s436 + $0x2c] sm:$0xf]
    %v449 = vld [vmem:[%s436 + $0x30] sm:$0xf]
    %v450 = vld [vmem:[%s436 + $0x34] sm:$0xf]
    %v451 = vld [vmem:[%s436 + $0x38] sm:$0xf]
    %v452 = vld [vmem:[%s436 + $0x3c] sm:$0xf]
    %v469 = vunpack.c.l.b16 %v437
    %v470 = vunpack.c.l.b16 %v438
    %v471 = vunpack.c.l.b16 %v439
    %v472 = vunpack.c.l.b16 %v440
    %v473 = vunpack.c.l.b16 %v441
    %v474 = vunpack.c.l.b16 %v442
    %v475 = vunpack.c.l.b16 %v443
    %v476 = vunpack.c.l.b16 %v444
    %v477 = vunpack.c.l.b16 %v445
    %v478 = vunpack.c.l.b16 %v446
    %v479 = vunpack.c.l.b16 %v447
    %v480 = vunpack.c.l.b16 %v448
    %v481 = vunpack.c.l.b16 %v449
    %v482 = vunpack.c.l.b16 %v450
    %v483 = vunpack.c.l.b16 %v451
    %v484 = vunpack.c.l.b16 %v452
    %v485 = vpack.c.b16 %v470, %v469
    %v486 = vpack.c.b16 %v472, %v471
    %v487 = vpack.c.b16 %v474, %v473
    %v488 = vpack.c.b16 %v476, %v475
    %v489 = vpack.c.b16 %v478, %v477
    %v490 = vpack.c.b16 %v480, %v479
    %v491 = vpack.c.b16 %v482, %v481
    %v492 = vpack.c.b16 %v484, %v483
    %501 = vmatprep.subr.bf16.mxu0 0
    %502 = vmatpush1.bf16.msra.mxu0 %v492
    %503 = vmatprep.subr.bf16.mxu0 0
    %504 = vmatpush1.bf16.msra.mxu0 %v491
    %505 = vmatprep.subr.bf16.mxu0 0
    %506 = vmatpush1.bf16.msra.mxu0 %v490
    %507 = vmatprep.subr.bf16.mxu0 0
    %508 = vmatpush1.bf16.msra.mxu0 %v489
    %509 = vmatprep.subr.bf16.mxu0 0
    %510 = vmatpush1.bf16.msra.mxu0 %v488
    %511 = vmatprep.subr.bf16.mxu0 0
    %512 = vmatpush1.bf16.msra.mxu0 %v487
    %513 = vmatprep.subr.bf16.mxu0 0
    %514 = vmatpush1.bf16.msra.mxu0 %v486
    %515 = vmatprep.subr.bf16.mxu0 0
    %516 = vmatpush1.bf16.msra.mxu0 %v485
    %517 = vmatprep.subr.bf16.mxu0 0
    %518 = vmatpush2.bf16.msra.mxu0 0
    %519 = vmatprep.subr.bf16.mxu0 0
    %520 = vmatpush2.bf16.msra.mxu0 0
    %521 = vmatprep.subr.bf16.mxu0 0
    %522 = vmatpush2.bf16.msra.mxu0 0
    %523 = vmatprep.subr.bf16.mxu0 0
    %524 = vmatpush2.bf16.msra.mxu0 0
    %525 = vmatprep.subr.bf16.mxu0 0
    %526 = vmatpush2.bf16.msra.mxu0 0
    %527 = vmatprep.subr.bf16.mxu0 0
    %528 = vmatpush2.bf16.msra.mxu0 0
    %529 = vmatprep.subr.bf16.mxu0 0
    %530 = vmatpush2.bf16.msra.mxu0 0
    %531 = vmatprep.subr.bf16.mxu0 0
    %532 = vmatpush2.bf16.msra.mxu0 0
    %533 = vmatprep.mubr.bf16.mxu0 0
    %534 = vmatmul.mubr.bf16.gmra.mxu0 %v205
    %v535 = vpop.f32.mrf.mxu0
    %v536 = vadd.f32 0.0, %v535
    %v537 = vpop.f32.mrf.mxu0
    %v538 = vpop.f32.mrf.mxu0
    %v539 = vadd.f32 0.0, %v538
    %v540 = vpop.f32.mrf.mxu0
    %541 = vmatprep.mubr.bf16.mxu0 0
    %542 = vmatmul.mubr.bf16.gmra.mxu0 %v206
    %v543 = vpop.f32.mrf.mxu0
    %v544 = vadd.f32 0.0, %v543
    %v545 = vpop.f32.mrf.mxu0
    %v546 = vpop.f32.mrf.mxu0
    %v547 = vadd.f32 0.0, %v546
    %v548 = vpop.f32.mrf.mxu0
    %549 = vmatprep.mubr.bf16.mxu0 0
    %550 = vmatmul.mubr.bf16.gmra.mxu0 %v207
    %v551 = vpop.f32.mrf.mxu0
    %v552 = vadd.f32 0.0, %v551
    %v553 = vpop.f32.mrf.mxu0
    %v554 = vpop.f32.mrf.mxu0
    %v555 = vpop.f32.mrf.mxu0
    %556 = vdwg.mxu0
    %vm562 = vcmask 1046528
    %v563 = vrot.slane %v415, 1
    %v564 = vrot.slane %v418, 1
    %v565 = vsel %vm562, %v563, %v564
    %v566 = vrot.slane %v423, 1
    %v567 = vsel %vm562, %v564, %v566
    %v568 = vrot.slane %v426, 1
    %v569 = vsel %vm562, %v566, %v568
    %v570 = vrot.slane %v431, 1
    %v571 = vsel %vm562, %v568, %v570
    %v577 = vadd.f32 %v294, %v565
    %v578 = vadd.f32 %v297, %v567
    %v579 = vadd.f32 %v302, %v569
    %v580 = vadd.f32 %v305, %v571
    %v581 = vadd.f32 %v310, %v570
    %vm587 = vcmask 1045504
    %v588 = vrot.slane %v536, 2
    %v589 = vrot.slane %v539, 2
    %v590 = vsel %vm587, %v588, %v589
    %v591 = vrot.slane %v544, 2
    %v592 = vsel %vm587, %v589, %v591
    %v593 = vrot.slane %v547, 2
    %v594 = vsel %vm587, %v591, %v593
    %v595 = vrot.slane %v552, 2
    %v596 = vsel %vm587, %v593, %v595
    %v602 = vadd.f32 %v577, %v590
    %v603 = vadd.f32 %v578, %v592
    %v604 = vadd.f32 %v579, %v594
    %v605 = vadd.f32 %v580, %v596
    %v606 = vadd.f32 %v581, %v595
    %v607 = vmax.f32 %v602, 0.0
    %v608 = vmax.f32 %v603, 0.0
    %v609 = vmax.f32 %v604, 0.0
    %v610 = vmax.f32 %v605, 0.0
    %v611 = vmax.f32 %v606, 0.0
    %v612 = vpack.c.bf16 %v608, %v607
    %v613 = vpack.c.bf16 %v610, %v609
    %v614 = vpack.c.bf16 %v611, %v611
    %v616 = vunpack.c.l.b16 %v612
    %v617 = vunpack.c.h.b16 %v612
    %v618 = vpack.c.b16 %v616, %v616
    %v619 = vpack.c.b16 %v617, %v617
    %v621 = vshrl.u32 %v618, 16
    %v623 = vrot.slane %v621, 7
    %v624 = vshll.u32 %v618, 16
    %v626 = vor.u32 %v623, %v624
    %v627 = vrot.slane %v623, 4
    %v629 = vshrl.u32 %v619, 16
    %v631 = vrot.slane %v629, 7
    %v632 = vshll.u32 %v619, 16
    %v634 = vor.u32 %v631, %v632
    %v635 = vsel %vm100, %v627, %v634
    %v636 = vrot.slane %v631, 4
    %v640 = vld [vmem:[#allocation3] sm:$0xf]
    %v641 = vsel %vm122, %v626, %v640
    %642 = vst [vmem:[#allocation3] sm:$0xf] %v641
    %643 = vst [vmem:[#allocation3 + $0x4] sm:$0xf] %v635
    %v644 = vld [vmem:[#allocation3 + $0x8] sm:$0x1]
    %v645 = vsel %vm59, %v636, %v644
    %646 = vst [vmem:[#allocation3 + $0x8] sm:$0x1] %v645
    %v649 = vunpack.c.l.b16 %v613
    %v650 = vunpack.c.h.b16 %v613
    %v651 = vunpack.c.l.b16 %v614
    %v652 = vpack.c.b16 %v649, %v649
    %v653 = vpack.c.b16 %v650, %v650
    %v654 = vpack.c.b16 %v651, %v651
    %v656 = vshrl.u32 %v652, 16
    %v658 = vrot.slane %v656, 7
    %v659 = vshll.u32 %v652, 16
    %v661 = vor.u32 %v658, %v659
    %v662 = vrot.slane %v658, 4
    %v664 = vshrl.u32 %v653, 16
    %v666 = vrot.slane %v664, 7
    %v667 = vshll.u32 %v653, 16
    %v669 = vor.u32 %v666, %v667
    %v670 = vsel %vm100, %v662, %v669
    %v671 = vrot.slane %v666, 4
    %v673 = vshrl.u32 %v654, 16
    %v675 = vrot.slane %v673, 7
    %v676 = vshll.u32 %v654, 16
    %v678 = vor.u32 %v675, %v676
    %v679 = vsel %vm100, %v671, %v678
    %v683 = vld [vmem:[#allocation3 + $0x8] sm:$0xe]
    %v684 = vsel %vm164, %v661, %v683
    %685 = vst [vmem:[#allocation3 + $0x8] sm:$0xe] %v684
    %686 = vst [vmem:[#allocation3 + $0xc] sm:$0xf] %v670
    %v687 = vld [vmem:[#allocation3 + $0x10] sm:$0x3]
    %v688 = vsel %vm170, %v679, %v687
    %689 = vst [vmem:[#allocation3 + $0x10] sm:$0x3] %v688
    %v690 = vld [vmem:[#allocation3] sm:$0xf]
    %v691 = vld [vmem:[#allocation3 + $0x4] sm:$0xf]
    %v692 = vld [vmem:[#allocation3 + $0x8] sm:$0xf]
    %v693 = vld [vmem:[#allocation3 + $0xc] sm:$0xf]
    %v694 = vld [vmem:[#allocation3 + $0x10] sm:$0x3]
    %v695 = vld [vmem:[#allocation9] sm:$0xf]
    %v696 = vld [vmem:[#allocation9 + $0x4] sm:$0xf]
    %v697 = vld [vmem:[#allocation9 + $0x8] sm:$0xf]
    %v698 = vld [vmem:[#allocation9 + $0xc] sm:$0xf]
    %v699 = vld [vmem:[#allocation9 + $0x10] sm:$0xf]
    %v700 = vld [vmem:[#allocation9 + $0x14] sm:$0xf]
    %v701 = vld [vmem:[#allocation9 + $0x18] sm:$0xf]
    %v702 = vld [vmem:[#allocation9 + $0x1c] sm:$0xf]
    %v703 = vld [vmem:[#allocation9 + $0x20] sm:$0xf]
    %v704 = vld [vmem:[#allocation9 + $0x24] sm:$0xf]
    %v705 = vld [vmem:[#allocation9 + $0x28] sm:$0xf]
    %v706 = vld [vmem:[#allocation9 + $0x2c] sm:$0xf]
    %v707 = vld [vmem:[#allocation9 + $0x30] sm:$0xf]
    %v708 = vld [vmem:[#allocation9 + $0x34] sm:$0xf]
    %v709 = vld [vmem:[#allocation9 + $0x38] sm:$0xf]
    %v710 = vld [vmem:[#allocation9 + $0x3c] sm:$0xf]
    %v716 = vunpack.c.l.b16 %v690
    %v717 = vunpack.c.l.b16 %v691
    %v718 = vunpack.c.l.b16 %v692
    %v719 = vunpack.c.l.b16 %v693
    %v720 = vunpack.c.l.b16 %v694
    %v721 = vpack.c.b16 %v717, %v716
    %v722 = vpack.c.b16 %v719, %v718
    %v723 = vpack.c.b16 %v720, %v720
    %v743 = vunpack.c.l.b16 %v695
    %v744 = vunpack.c.l.b16 %v696
    %v745 = vunpack.c.l.b16 %v697
    %v746 = vunpack.c.l.b16 %v698
    %v747 = vunpack.c.l.b16 %v699
    %v748 = vunpack.c.l.b16 %v700
    %v749 = vunpack.c.l.b16 %v701
    %v750 = vunpack.c.l.b16 %v702
    %v751 = vunpack.c.l.b16 %v703
    %v752 = vunpack.c.l.b16 %v704
    %v753 = vunpack.c.l.b16 %v705
    %v754 = vunpack.c.l.b16 %v706
    %v755 = vunpack.c.l.b16 %v707
    %v756 = vunpack.c.l.b16 %v708
    %v757 = vunpack.c.l.b16 %v709
    %v758 = vunpack.c.l.b16 %v710
    %v759 = vpack.c.b16 %v744, %v743
    %v760 = vpack.c.b16 %v746, %v745
    %v761 = vpack.c.b16 %v748, %v747
    %v762 = vpack.c.b16 %v750, %v749
    %v763 = vpack.c.b16 %v752, %v751
    %v764 = vpack.c.b16 %v754, %v753
    %v765 = vpack.c.b16 %v756, %v755
    %v766 = vpack.c.b16 %v758, %v757
    %775 = vmatprep.subr.bf16.mxu0 0
    %776 = vmatpush1.bf16.msra.mxu0 %v766
    %777 = vmatprep.subr.bf16.mxu0 0
    %778 = vmatpush1.bf16.msra.mxu0 %v765
    %779 = vmatprep.subr.bf16.mxu0 0
    %780 = vmatpush1.bf16.msra.mxu0 %v764
    %781 = vmatprep.subr.bf16.mxu0 0
    %782 = vmatpush1.bf16.msra.mxu0 %v763
    %783 = vmatprep.subr.bf16.mxu0 0
    %784 = vmatpush1.bf16.msra.mxu0 %v762
    %785 = vmatprep.subr.bf16.mxu0 0
    %786 = vmatpush1.bf16.msra.mxu0 %v761
    %787 = vmatprep.subr.bf16.mxu0 0
    %788 = vmatpush1.bf16.msra.mxu0 %v760
    %789 = vmatprep.subr.bf16.mxu0 0
    %790 = vmatpush1.bf16.msra.mxu0 %v759
    %791 = vmatprep.subr.bf16.mxu0 0
    %792 = vmatpush2.bf16.msra.mxu0 0
    %793 = vmatprep.subr.bf16.mxu0 0
    %794 = vmatpush2.bf16.msra.mxu0 0
    %795 = vmatprep.subr.bf16.mxu0 0
    %796 = vmatpush2.bf16.msra.mxu0 0
    %797 = vmatprep.subr.bf16.mxu0 0
    %798 = vmatpush2.bf16.msra.mxu0 0
    %799 = vmatprep.subr.bf16.mxu0 0
    %800 = vmatpush2.bf16.msra.mxu0 0
    %801 = vmatprep.subr.bf16.mxu0 0
    %802 = vmatpush2.bf16.msra.mxu0 0
    %803 = vmatprep.subr.bf16.mxu0 0
    %804 = vmatpush2.bf16.msra.mxu0 0
    %805 = vmatprep.subr.bf16.mxu0 0
    %806 = vmatpush2.bf16.msra.mxu0 0
    %807 = vmatprep.mubr.bf16.mxu0 0
    %808 = vmatmul.mubr.bf16.gmra.mxu0 %v721
    %v809 = vpop.f32.mrf.mxu0
    %v810 = vadd.f32 0.0, %v809
    %v811 = vpop.f32.mrf.mxu0
    %v812 = vpop.f32.mrf.mxu0
    %v813 = vadd.f32 0.0, %v812
    %v814 = vpop.f32.mrf.mxu0
    %815 = vmatprep.mubr.bf16.mxu0 0
    %816 = vmatmul.mubr.bf16.gmra.mxu0 %v722
    %v817 = vpop.f32.mrf.mxu0
    %v818 = vadd.f32 0.0, %v817
    %v819 = vpop.f32.mrf.mxu0
    %v820 = vpop.f32.mrf.mxu0
    %v821 = vadd.f32 0.0, %v820
    %v822 = vpop.f32.mrf.mxu0
    %823 = vmatprep.mubr.bf16.mxu0 0
    %824 = vmatmul.mubr.bf16.gmra.mxu0 %v723
    %v825 = vpop.f32.mrf.mxu0
    %v826 = vadd.f32 0.0, %v825
    %v827 = vpop.f32.mrf.mxu0
    %v828 = vpop.f32.mrf.mxu0
    %v829 = vpop.f32.mrf.mxu0
    %830 = vdwg.mxu0
    %s831 = scalar_lea.vmem [#allocation9], 64
    %v832 = vld [vmem:[%s831] sm:$0xf]
    %v833 = vld [vmem:[%s831 + $0x4] sm:$0xf]
    %v834 = vld [vmem:[%s831 + $0x8] sm:$0xf]
    %v835 = vld [vmem:[%s831 + $0xc] sm:$0xf]
    %v836 = vld [vmem:[%s831 + $0x10] sm:$0xf]
    %v837 = vld [vmem:[%s831 + $0x14] sm:$0xf]
    %v838 = vld [vmem:[%s831 + $0x18] sm:$0xf]
    %v839 = vld [vmem:[%s831 + $0x1c] sm:$0xf]
    %v840 = vld [vmem:[%s831 + $0x20] sm:$0xf]
    %v841 = vld [vmem:[%s831 + $0x24] sm:$0xf]
    %v842 = vld [vmem:[%s831 + $0x28] sm:$0xf]
    %v843 = vld [vmem:[%s831 + $0x2c] sm:$0xf]
    %v844 = vld [vmem:[%s831 + $0x30] sm:$0xf]
    %v845 = vld [vmem:[%s831 + $0x34] sm:$0xf]
    %v846 = vld [vmem:[%s831 + $0x38] sm:$0xf]
    %v847 = vld [vmem:[%s831 + $0x3c] sm:$0xf]
    %v864 = vunpack.c.l.b16 %v832
    %v865 = vunpack.c.l.b16 %v833
    %v866 = vunpack.c.l.b16 %v834
    %v867 = vunpack.c.l.b16 %v835
    %v868 = vunpack.c.l.b16 %v836
    %v869 = vunpack.c.l.b16 %v837
    %v870 = vunpack.c.l.b16 %v838
    %v871 = vunpack.c.l.b16 %v839
    %v872 = vunpack.c.l.b16 %v840
    %v873 = vunpack.c.l.b16 %v841
    %v874 = vunpack.c.l.b16 %v842
    %v875 = vunpack.c.l.b16 %v843
    %v876 = vunpack.c.l.b16 %v844
    %v877 = vunpack.c.l.b16 %v845
    %v878 = vunpack.c.l.b16 %v846
    %v879 = vunpack.c.l.b16 %v847
    %v880 = vpack.c.b16 %v865, %v864
    %v881 = vpack.c.b16 %v867, %v866
    %v882 = vpack.c.b16 %v869, %v868
    %v883 = vpack.c.b16 %v871, %v870
    %v884 = vpack.c.b16 %v873, %v872
    %v885 = vpack.c.b16 %v875, %v874
    %v886 = vpack.c.b16 %v877, %v876
    %v887 = vpack.c.b16 %v879, %v878
    %896 = vmatprep.subr.bf16.mxu0 0
    %897 = vmatpush1.bf16.msra.mxu0 %v887
    %898 = vmatprep.subr.bf16.mxu0 0
    %899 = vmatpush1.bf16.msra.mxu0 %v886
    %900 = vmatprep.subr.bf16.mxu0 0
    %901 = vmatpush1.bf16.msra.mxu0 %v885
    %902 = vmatprep.subr.bf16.mxu0 0
    %903 = vmatpush1.bf16.msra.mxu0 %v884
    %904 = vmatprep.subr.bf16.mxu0 0
    %905 = vmatpush1.bf16.msra.mxu0 %v883
    %906 = vmatprep.subr.bf16.mxu0 0
    %907 = vmatpush1.bf16.msra.mxu0 %v882
    %908 = vmatprep.subr.bf16.mxu0 0
    %909 = vmatpush1.bf16.msra.mxu0 %v881
    %910 = vmatprep.subr.bf16.mxu0 0
    %911 = vmatpush1.bf16.msra.mxu0 %v880
    %912 = vmatprep.subr.bf16.mxu0 0
    %913 = vmatpush2.bf16.msra.mxu0 0
    %914 = vmatprep.subr.bf16.mxu0 0
    %915 = vmatpush2.bf16.msra.mxu0 0
    %916 = vmatprep.subr.bf16.mxu0 0
    %917 = vmatpush2.bf16.msra.mxu0 0
    %918 = vmatprep.subr.bf16.mxu0 0
    %919 = vmatpush2.bf16.msra.mxu0 0
    %920 = vmatprep.subr.bf16.mxu0 0
    %921 = vmatpush2.bf16.msra.mxu0 0
    %922 = vmatprep.subr.bf16.mxu0 0
    %923 = vmatpush2.bf16.msra.mxu0 0
    %924 = vmatprep.subr.bf16.mxu0 0
    %925 = vmatpush2.bf16.msra.mxu0 0
    %926 = vmatprep.subr.bf16.mxu0 0
    %927 = vmatpush2.bf16.msra.mxu0 0
    %928 = vmatprep.mubr.bf16.mxu0 0
    %929 = vmatmul.mubr.bf16.gmra.mxu0 %v721
    %v930 = vpop.f32.mrf.mxu0
    %v931 = vadd.f32 0.0, %v930
    %v932 = vpop.f32.mrf.mxu0
    %v933 = vpop.f32.mrf.mxu0
    %v934 = vadd.f32 0.0, %v933
    %v935 = vpop.f32.mrf.mxu0
    %936 = vmatprep.mubr.bf16.mxu0 0
    %937 = vmatmul.mubr.bf16.gmra.mxu0 %v722
    %v938 = vpop.f32.mrf.mxu0
    %v939 = vadd.f32 0.0, %v938
    %v940 = vpop.f32.mrf.mxu0
    %v941 = vpop.f32.mrf.mxu0
    %v942 = vadd.f32 0.0, %v941
    %v943 = vpop.f32.mrf.mxu0
    %944 = vmatprep.mubr.bf16.mxu0 0
    %945 = vmatmul.mubr.bf16.gmra.mxu0 %v723
    %v946 = vpop.f32.mrf.mxu0
    %v947 = vadd.f32 0.0, %v946
    %v948 = vpop.f32.mrf.mxu0
    %v949 = vpop.f32.mrf.mxu0
    %v950 = vpop.f32.mrf.mxu0
    %951 = vdwg.mxu0
    %s952 = scalar_lea.vmem [#allocation9], 128
    %v953 = vld [vmem:[%s952] sm:$0xf]
    %v954 = vld [vmem:[%s952 + $0x4] sm:$0xf]
    %v955 = vld [vmem:[%s952 + $0x8] sm:$0xf]
    %v956 = vld [vmem:[%s952 + $0xc] sm:$0xf]
    %v957 = vld [vmem:[%s952 + $0x10] sm:$0xf]
    %v958 = vld [vmem:[%s952 + $0x14] sm:$0xf]
    %v959 = vld [vmem:[%s952 + $0x18] sm:$0xf]
    %v960 = vld [vmem:[%s952 + $0x1c] sm:$0xf]
    %v961 = vld [vmem:[%s952 + $0x20] sm:$0xf]
    %v962 = vld [vmem:[%s952 + $0x24] sm:$0xf]
    %v963 = vld [vmem:[%s952 + $0x28] sm:$0xf]
    %v964 = vld [vmem:[%s952 + $0x2c] sm:$0xf]
    %v965 = vld [vmem:[%s952 + $0x30] sm:$0xf]
    %v966 = vld [vmem:[%s952 + $0x34] sm:$0xf]
    %v967 = vld [vmem:[%s952 + $0x38] sm:$0xf]
    %v968 = vld [vmem:[%s952 + $0x3c] sm:$0xf]
    %v985 = vunpack.c.l.b16 %v953
    %v986 = vunpack.c.l.b16 %v954
    %v987 = vunpack.c.l.b16 %v955
    %v988 = vunpack.c.l.b16 %v956
    %v989 = vunpack.c.l.b16 %v957
    %v990 = vunpack.c.l.b16 %v958
    %v991 = vunpack.c.l.b16 %v959
    %v992 = vunpack.c.l.b16 %v960
    %v993 = vunpack.c.l.b16 %v961
    %v994 = vunpack.c.l.b16 %v962
    %v995 = vunpack.c.l.b16 %v963
    %v996 = vunpack.c.l.b16 %v964
    %v997 = vunpack.c.l.b16 %v965
    %v998 = vunpack.c.l.b16 %v966
    %v999 = vunpack.c.l.b16 %v967
    %v1000 = vunpack.c.l.b16 %v968
    %v1001 = vpack.c.b16 %v986, %v985
    %v1002 = vpack.c.b16 %v988, %v987
    %v1003 = vpack.c.b16 %v990, %v989
    %v1004 = vpack.c.b16 %v992, %v991
    %v1005 = vpack.c.b16 %v994, %v993
    %v1006 = vpack.c.b16 %v996, %v995
    %v1007 = vpack.c.b16 %v998, %v997
    %v1008 = vpack.c.b16 %v1000, %v999
    %1017 = vmatprep.subr.bf16.mxu0 0
    %1018 = vmatpush1.bf16.msra.mxu0 %v1008
    %1019 = vmatprep.subr.bf16.mxu0 0
    %1020 = vmatpush1.bf16.msra.mxu0 %v1007
    %1021 = vmatprep.subr.bf16.mxu0 0
    %1022 = vmatpush1.bf16.msra.mxu0 %v1006
    %1023 = vmatprep.subr.bf16.mxu0 0
    %1024 = vmatpush1.bf16.msra.mxu0 %v1005
    %1025 = vmatprep.subr.bf16.mxu0 0
    %1026 = vmatpush1.bf16.msra.mxu0 %v1004
    %1027 = vmatprep.subr.bf16.mxu0 0
    %1028 = vmatpush1.bf16.msra.mxu0 %v1003
    %1029 = vmatprep.subr.bf16.mxu0 0
    %1030 = vmatpush1.bf16.msra.mxu0 %v1002
    %1031 = vmatprep.subr.bf16.mxu0 0
    %1032 = vmatpush1.bf16.msra.mxu0 %v1001
    %1033 = vmatprep.subr.bf16.mxu0 0
    %1034 = vmatpush2.bf16.msra.mxu0 0
    %1035 = vmatprep.subr.bf16.mxu0 0
    %1036 = vmatpush2.bf16.msra.mxu0 0
    %1037 = vmatprep.subr.bf16.mxu0 0
    %1038 = vmatpush2.bf16.msra.mxu0 0
    %1039 = vmatprep.subr.bf16.mxu0 0
    %1040 = vmatpush2.bf16.msra.mxu0 0
    %1041 = vmatprep.subr.bf16.mxu0 0
    %1042 = vmatpush2.bf16.msra.mxu0 0
    %1043 = vmatprep.subr.bf16.mxu0 0
    %1044 = vmatpush2.bf16.msra.mxu0 0
    %1045 = vmatprep.subr.bf16.mxu0 0
    %1046 = vmatpush2.bf16.msra.mxu0 0
    %1047 = vmatprep.subr.bf16.mxu0 0
    %1048 = vmatpush2.bf16.msra.mxu0 0
    %1049 = vmatprep.mubr.bf16.mxu0 0
    %1050 = vmatmul.mubr.bf16.gmra.mxu0 %v721
    %v1051 = vpop.f32.mrf.mxu0
    %v1052 = vadd.f32 0.0, %v1051
    %v1053 = vpop.f32.mrf.mxu0
    %v1054 = vpop.f32.mrf.mxu0
    %v1055 = vadd.f32 0.0, %v1054
    %v1056 = vpop.f32.mrf.mxu0
    %1057 = vmatprep.mubr.bf16.mxu0 0
    %1058 = vmatmul.mubr.bf16.gmra.mxu0 %v722
    %v1059 = vpop.f32.mrf.mxu0
    %v1060 = vadd.f32 0.0, %v1059
    %v1061 = vpop.f32.mrf.mxu0
    %v1062 = vpop.f32.mrf.mxu0
    %v1063 = vadd.f32 0.0, %v1062
    %v1064 = vpop.f32.mrf.mxu0
    %1065 = vmatprep.mubr.bf16.mxu0 0
    %1066 = vmatmul.mubr.bf16.gmra.mxu0 %v723
    %v1067 = vpop.f32.mrf.mxu0
    %v1068 = vadd.f32 0.0, %v1067
    %v1069 = vpop.f32.mrf.mxu0
    %v1070 = vpop.f32.mrf.mxu0
    %v1071 = vpop.f32.mrf.mxu0
    %1072 = vdwg.mxu0
    %v1078 = vrot.slane %v931, 1
    %v1079 = vrot.slane %v934, 1
    %v1080 = vsel %vm562, %v1078, %v1079
    %v1081 = vrot.slane %v939, 1
    %v1082 = vsel %vm562, %v1079, %v1081
    %v1083 = vrot.slane %v942, 1
    %v1084 = vsel %vm562, %v1081, %v1083
    %v1085 = vrot.slane %v947, 1
    %v1086 = vsel %vm562, %v1083, %v1085
    %v1092 = vadd.f32 %v810, %v1080
    %v1093 = vadd.f32 %v813, %v1082
    %v1094 = vadd.f32 %v818, %v1084
    %v1095 = vadd.f32 %v821, %v1086
    %v1096 = vadd.f32 %v826, %v1085
    %v1102 = vrot.slane %v1052, 2
    %v1103 = vrot.slane %v1055, 2
    %v1104 = vsel %vm587, %v1102, %v1103
    %v1105 = vrot.slane %v1060, 2
    %v1106 = vsel %vm587, %v1103, %v1105
    %v1107 = vrot.slane %v1063, 2
    %v1108 = vsel %vm587, %v1105, %v1107
    %v1109 = vrot.slane %v1068, 2
    %v1110 = vsel %vm587, %v1107, %v1109
    %v1116 = vadd.f32 %v1092, %v1104
    %v1117 = vadd.f32 %v1093, %v1106
    %v1118 = vadd.f32 %v1094, %v1108
    %v1119 = vadd.f32 %v1095, %v1110
    %v1120 = vadd.f32 %v1096, %v1109
    %v1121 = vld [vmem:[#allocation4] sm:$0xff]
    %v1122 = vld [vmem:[#allocation4 + $0x8] sm:$0xff]
    %v1123 = vadd.f32 %v1116, %v1121
    %v1124 = vadd.f32 %v1117, %v1122
    %v1125 = vmax.f32 %v1123, 0.0
    %v1126 = vmax.f32 %v1124, 0.0
    %1127 = vst [vmem:[#allocation10] sm:$0xff] %v1125
    %1128 = vst [vmem:[#allocation10 + $0x8] sm:$0xff] %v1126
    %v1129 = vld [vmem:[%s130] sm:$0xff]
    %v1130 = vld [vmem:[%s130 + $0x8] sm:$0xff]
    %vm1133 = vcmask 1041408
    %v1134 = vrot.slane %v1129, 6
    %v1135 = vrot.slane %v1130, 6
    %v1136 = vsel %vm1133, %v1134, %v1135
    %v1140 = vadd.f32 %v1118, %v1134
    %v1141 = vadd.f32 %v1119, %v1136
    %v1142 = vadd.f32 %v1120, %v1135
    %v1143 = vmax.f32 %v1140, 0.0
    %v1144 = vmax.f32 %v1141, 0.0
    %v1145 = vmax.f32 %v1142, 0.0
    %s1146 = scalar_lea.vmem [#allocation10], 16
    %1147 = vst [vmem:[%s1146 - $0x2] sm:$0xfc] %v1143
    %1148 = vst [vmem:[%s1146 + $0x6] sm:$0xff] %v1144
    %1149 = vst [vmem:[%s1146 + $0xe] sm:$0x3] %v1145
    // Predicated region
    $region26: #{tpu_custom_call.1} parent=1 // pred_check
      _
    $region27: #{tpu_custom_call.1} parent=1 // pred_check_branch
      %1151 = sbr.rel (0) target = $region29
    $region28: #{tpu_custom_call.1} parent=1 // pred_region
      %s1153 = ssub.s32 512, 512
      %1154 = vsyncadd [#allocation6], %s1153
      %s1155 = sshll.u32 [#allocation10], 4
      %s1156 = int_to_ptr.vmem [resolvable:$true] %s1155
      %1161 = dma.vmem_to_hbm [thread:$0]  %s1156, 512, %s3, [#allocation6], 128, 128, 8
    $region29: #{tpu_custom_call.1} parent=1 // pred_fallthru
      _
    // Predicated region
    $region30: #{tpu_custom_call.1} parent=1 // pred_check
      _
    $region31: #{tpu_custom_call.1} parent=1 // pred_check_branch
      %1163 = sbr.rel (0) target = $region33
    $region32: #{tpu_custom_call.1} parent=1 // pred_region
      %1164 = dma.done [#allocation6], 512
    $region33: #{tpu_custom_call.1} parent=1 // pred_fallthru
      _
    %1165 = vsyncpa [#allocation5], 1
    %1166 = vsyncpa [#allocation8], 1
    %1167 = vsyncpa [#allocation6], 1

</llo_original>
